<compile_context>
chip_gen: v7x
topology: tpu7x:2x2x1
jax: 0.10.0
libtpu: 0.0.40
codegen_flags: <defaults>
</compile_context>

<pallas_src>
import functools

import jax
import jax.numpy as jnp
import numpy as np
from jax.experimental import pallas as pl
from jax.experimental.pallas import tpu as pltpu


# The PyTorch module builds its activation via eval(f'nn.{activation}()');
# we support the common ones explicitly (default ReLU).
_ACTIVATIONS = {
    "ReLU": lambda y: jnp.maximum(y, 0.0),
    "GELU": jax.nn.gelu,
    "Tanh": jnp.tanh,
    "Sigmoid": jax.nn.sigmoid,
    "Identity": lambda y: y,
}


# ------------------------------ fused kernel --------------------------------

def _linear_act_kernel(x_ref, w_ref, b_ref, o_ref, acc_ref, *, act):
    # x_ref  : (tm, tk)  row/K tile of flattened features
    # w_ref  : (tk, tn)  bf16 weight slab (pre-transposed to (D, O) layout)
    # b_ref  : (1,  tn)  bias slab (f32)
    # o_ref  : (tm, tn)  output tile (resident across the K axis)
    # acc_ref: (tm, tn)  f32 accumulator scratch
    k = pl.program_id(2)

    @pl.when(k == 0)
    def _():
        acc_ref[...] = jnp.zeros_like(acc_ref)

    x = x_ref[...].astype(w_ref.dtype)        # bf16 operands -> native MXU path
    acc_ref[...] += jnp.dot(x, w_ref[...], preferred_element_type=jnp.float32)

    @pl.when(k == pl.num_programs(2) - 1)
    def _():
        y = acc_ref[...] + b_ref[...].astype(jnp.float32)
        o_ref[...] = act(y).astype(o_ref.dtype)


# ------------------------------ tile selection -------------------------------

def _round_up(x, m):
    return ((x + m - 1) // m) * m


def _pick_tiles(n_rows, d, o, row_tile):
    # Row tile: multiple of 8 (sublane); small inputs collapse to one block.
    tm = min(row_tile, _round_up(n_rows, 8))
    # Output-column tile: full dim if small, else 512 (multiple of 256 to keep
    # the 2x256x256 MXU on v6e/v7x fully fed; also fine on v5e's 4x128x128).
    tn = o if o <= 1024 else 512
    # Reduction tile MUST divide D exactly: boundary K blocks would feed
    # undefined padding into the accumulator and corrupt in-bounds outputs.
    if d <= 1024:
        tk = d
    else:
        tk = next((t for t in (1024, 768, 512, 384, 256, 128) if d % t == 0), d)
        # TODO(synk): mask the K tail instead of falling back to tk=D when no
        # nice divisor exists.
    return tm, tn, tk


# -------------------------------- wrapper ------------------------------------

def linear_forward(features, wt, bias, *, activation="ReLU", row_tile=512):
    """features: (..., D). wt: (D, O) pre-transposed (bf16 recommended).
    bias: (O,) f32. Returns (act(features @ wt + bias), {})."""
    orig_shape = features.shape
    D = orig_shape[-1]
    Dw, O = wt.shape
    assert Dw == D, f"weight is (D, O); got D={Dw} vs features D={D}"

    x2d = features.reshape(-1, D)
    N = x2d.shape[0]
    b2 = bias.reshape(1, O)

    tm, tn, tk = _pick_tiles(N, D, O, row_tile)
    grid = (pl.cdiv(N, tm), pl.cdiv(O, tn), D // tk)

    # VMEM budget: double-buffered x/w/bias/out blocks + f32 accumulator.
    # Raise the scoped limit above the 16/32 MiB defaults, cap at 48 MiB so the
    # same configuration still fits v7x's 64 MiB physical VMEM per TensorCore.
    est = 2 * (tm * tk * x2d.dtype.itemsize
               + tk * tn * wt.dtype.itemsize
               + tn * bias.dtype.itemsize
               + tm * tn * features.dtype.itemsize) + tm * tn * 4
    vmem_limit = int(min(max(2 * est, 32 << 20), 48 << 20))

    kernel = functools.partial(_linear_act_kernel, act=_ACTIVATIONS[activation])

    out = pl.pallas_call(
        kernel,
        out_shape=jax.ShapeDtypeStruct((N, O), features.dtype),
        grid_spec=pltpu.PrefetchScalarGridSpec(
            num_scalar_prefetch=0,
            grid=grid,
            in_specs=[
                pl.BlockSpec((tm, tk), lambda i, j, k: (i, k)),   # x row/K tile
                pl.BlockSpec((tk, tn), lambda i, j, k: (k, j)),   # weight slab
                pl.BlockSpec((1, tn), lambda i, j, k: (0, j)),    # bias slab
            ],
            out_specs=pl.BlockSpec((tm, tn), lambda i, j, k: (i, j)),
            scratch_shapes=[pltpu.VMEM((tm, tn), jnp.float32)],
        ),
        compiler_params=pltpu.CompilerParams(
            dimension_semantics=("parallel", "parallel", "arbitrary"),
            vmem_limit_bytes=vmem_limit,
        ),
    )(x2d, wt, b2)

    return out.reshape(*orig_shape[:-1], O), {}


# ------------------------ deterministic parameters ---------------------------

def make_linear_params(key, input_dim, output_dim, *, param_dtype=jnp.bfloat16):
    """PyTorch nn.Linear default init U(-1/sqrt(fan_in), +1/sqrt(fan_in)),
    stored kernel-ready: weight pre-transposed ONCE to (D, O) and cast ONCE to
    bf16 (no per-call transpose / cast HBM passes); bias kept f32."""
    k_w, k_b = jax.random.split(key)
    bound = 1.0 / float(np.sqrt(input_dim))
    w = jax.random.uniform(k_w, (output_dim, input_dim), jnp.float32, -bound, bound)
    b = jax.random.uniform(k_b, (output_dim,), jnp.float32, -bound, bound)
    return w.T.astype(param_dtype), b          # (D, O) bf16, (O,) f32


# ----------------------------------- main -------------------------------------

if __name__ == "__main__":
    B, T = 2, 8
    INPUT_DIM, OUTPUT_DIM = 64, 128            # lane-dense output

    key = jax.random.PRNGKey(0)
    k_feat, k_par = jax.random.split(key)
    features = jax.random.normal(k_feat, (B, T, INPUT_DIM), jnp.float32)
    wt, bias = make_linear_params(k_par, INPUT_DIM, OUTPUT_DIM)

    predicted, aux = linear_forward(features, wt, bias)
    predicted = jax.block_until_ready(predicted)
    assert predicted.shape == (B, T, OUTPUT_DIM) and aux == {}

    # Host reference with identical operand rounding (bf16 inputs, f32 accumulate).
    x_ref = np.asarray(features.astype(jnp.bfloat16).astype(jnp.float32))
    w_ref = np.asarray(wt.astype(jnp.float32))
    b_ref = np.asarray(bias)
    ref = np.maximum(x_ref.reshape(-1, INPUT_DIM) @ w_ref + b_ref, 0.0)
    ref = ref.reshape(B, T, OUTPUT_DIM)
    np.testing.assert_allclose(np.asarray(predicted), ref, rtol=1e-3, atol=1e-3)

    # Ragged row count: exercises the cdiv grid + dropped OOB writes
    # (no jnp.pad of x, no out[:N] slice).
    feats2 = jax.random.normal(jax.random.PRNGKey(1), (3, 5, INPUT_DIM), jnp.float32)
    pred2, _ = linear_forward(feats2, wt, bias)
    pred2 = jax.block_until_ready(pred2)
    x2 = np.asarray(feats2.astype(jnp.bfloat16).astype(jnp.float32))
    ref2 = np.maximum(x2.reshape(-1, INPUT_DIM) @ w_ref + b_ref, 0.0)
    ref2 = ref2.reshape(3, 5, OUTPUT_DIM)
    np.testing.assert_allclose(np.asarray(pred2), ref2, rtol=1e-3, atol=1e-3)

    print("KERNEL_OK")
</pallas_src>

<mosaic_0001>
module attributes {stable_mosaic.version = 11 : i64} {
  func.func @_linear_act_kernel(%arg0: i32, %arg1: i32, %arg2: i32, %arg3: memref<16x64xf32, #tpu.memory_space<vmem>>, %arg4: memref<64x128xbf16, #tpu.memory_space<vmem>>, %arg5: memref<1x128xf32, #tpu.memory_space<vmem>>, %arg6: memref<16x128xf32, #tpu.memory_space<vmem>>, %arg7: memref<16x128xf32, #tpu.memory_space<vmem>>) attributes {dimension_semantics = [#tpu.dimension_semantics<parallel>, #tpu.dimension_semantics<parallel>, #tpu.dimension_semantics<arbitrary>], iteration_bounds = array<i64: 1, 1, 1>, scalar_prefetch = 0 : i64, scratch_operands = 1 : i64, tpu.core_type = #tpu.core_type<tc>, window_params = [{transform_indices = @transform_0, window_bounds = array<i64: 16, 64>}, {transform_indices = @transform_1, window_bounds = array<i64: 64, 128>}, {transform_indices = @transform_2, window_bounds = array<i64: 1, 128>}, {transform_indices = @transform_3, window_bounds = array<i64: 16, 128>}]} {
    %c0_i32 = arith.constant 0 : i32
    %0 = arith.cmpi eq, %arg2, %c0_i32 : i32
    %1 = arith.extui %0 : i1 to i32
    %c0_i32_0 = arith.constant 0 : i32
    %2 = arith.cmpi ne, %1, %c0_i32_0 : i32
    scf.if %2 {
      %cst_10 = arith.constant 0.000000e+00 : f32
      %13 = vector.broadcast %cst_10 : f32 to vector<16x128xf32>
      %c0_11 = arith.constant 0 : index
      %c0_12 = arith.constant 0 : index
      %14 = vector.load %arg7[%c0_11, %c0_12] : memref<16x128xf32, #tpu.memory_space<vmem>>, vector<16x128xf32>
      tpu.vector_store %arg7[%c0_11, %c0_12], %13 {strides = array<i32>} : memref<16x128xf32, #tpu.memory_space<vmem>>, vector<16x128xf32>,
    } else {
    }
    %c0 = arith.constant 0 : index
    %c0_1 = arith.constant 0 : index
    %3 = vector.load %arg3[%c0, %c0_1] : memref<16x64xf32, #tpu.memory_space<vmem>>, vector<16x64xf32>
    %4 = arith.truncf %3 : vector<16x64xf32> to vector<16x64xbf16>
    %c0_2 = arith.constant 0 : index
    %c0_3 = arith.constant 0 : index
    %5 = vector.load %arg7[%c0_2, %c0_3] : memref<16x128xf32, #tpu.memory_space<vmem>>, vector<16x128xf32>
    %c0_4 = arith.constant 0 : index
    %c0_5 = arith.constant 0 : index
    %6 = vector.load %arg4[%c0_4, %c0_5] : memref<64x128xbf16, #tpu.memory_space<vmem>>, vector<64x128xbf16>
    %cst = arith.constant dense<0.000000e+00> : vector<16x128xf32>
    %7 = tpu.matmul %4, %6, %cst {dimension_numbers = #tpu.dot_dimension_numbers<[1], [0], [0], [1], [0, 0, 1, 1], [], []>} : vector<16x64xbf16>, vector<64x128xbf16>, vector<16x128xf32> -> vector<16x128xf32>
    %8 = arith.addf %5, %7 : vector<16x128xf32>
    %c0_6 = arith.constant 0 : index
    %c0_7 = arith.constant 0 : index
    %9 = vector.load %arg7[%c0_6, %c0_7] : memref<16x128xf32, #tpu.memory_space<vmem>>, vector<16x128xf32>
    tpu.vector_store %arg7[%c0_6, %c0_7], %8 {strides = array<i32>} : memref<16x128xf32, #tpu.memory_space<vmem>>, vector<16x128xf32>,
    %c0_i32_8 = arith.constant 0 : i32
    %10 = arith.cmpi eq, %arg2, %c0_i32_8 : i32
    %11 = arith.extui %10 : i1 to i32
    %c0_i32_9 = arith.constant 0 : i32
    %12 = arith.cmpi ne, %11, %c0_i32_9 : i32
    scf.if %12 {
      %c0_10 = arith.constant 0 : index
      %c0_11 = arith.constant 0 : index
      %13 = vector.load %arg7[%c0_10, %c0_11] : memref<16x128xf32, #tpu.memory_space<vmem>>, vector<16x128xf32>
      %c0_12 = arith.constant 0 : index
      %c0_13 = arith.constant 0 : index
      %14 = vector.load %arg5[%c0_12, %c0_13] : memref<1x128xf32, #tpu.memory_space<vmem>>, vector<1x128xf32>
      %15 = vector.broadcast %14 : vector<1x128xf32> to vector<16x128xf32>
      %16 = arith.addf %13, %15 : vector<16x128xf32>
      %cst_14 = arith.constant 0.000000e+00 : f32
      %17 = vector.broadcast %cst_14 : f32 to vector<16x128xf32>
      %18 = arith.maximumf %16, %17 : vector<16x128xf32>
      %c0_15 = arith.constant 0 : index
      %c0_16 = arith.constant 0 : index
      %19 = vector.load %arg6[%c0_15, %c0_16] : memref<16x128xf32, #tpu.memory_space<vmem>>, vector<16x128xf32>
      tpu.vector_store %arg6[%c0_15, %c0_16], %18 {strides = array<i32>} : memref<16x128xf32, #tpu.memory_space<vmem>>, vector<16x128xf32>,
    } else {
    }
    return
  }
  func.func @transform_0(%arg0: i32, %arg1: i32, %arg2: i32) -> (i32, i32) {
    %c0_i32 = arith.constant 0 : i32
    return %arg0, %arg2 : i32, i32
  }
  func.func @transform_1(%arg0: i32, %arg1: i32, %arg2: i32) -> (i32, i32) {
    %c0_i32 = arith.constant 0 : i32
    return %arg2, %arg1 : i32, i32
  }
  func.func @transform_2(%arg0: i32, %arg1: i32, %arg2: i32) -> (i32, i32) {
    %c0_i32 = arith.constant 0 : i32
    %c0_i32_0 = arith.constant 0 : i32
    return %c0_i32, %arg1 : i32, i32
  }
  func.func @transform_3(%arg0: i32, %arg1: i32, %arg2: i32) -> (i32, i32) {
    %c0_i32 = arith.constant 0 : i32
    return %arg0, %arg1 : i32, i32
  }
}

</mosaic_0001>

<llo_original>
// kernel: tpu_custom_call.1
$region0: #{tpu_custom_call.1}
  #allocation0 [shape = 'u32[]', space=smem, size = 0x4, offset = 0x4, fixed_abs, tag = 'smem constant byte address 0x4 - core index']
  #allocation1 [shape = 'u32[144,128]{1,0:T(1,128)}', space=vmem, size = 0x12000, scoped, tag = 'internal scratch']
  #allocation2 [shape = 'f32[16,128]{1,0:T(8,128)}', space=vmem, size = 0x2000, scoped, tag = 'scratch operand']
  %s0 = inlined_call_operand.hbm [shape: f32[16,64], index: 0, kind: input, shape index: {}]
  %s1 = inlined_call_operand.hbm [shape: bf16[64,128], index: 1, kind: input, shape index: {}]
  %s2 = inlined_call_operand.vmem [shape: f32[1,128], index: 2, kind: input, shape index: {}]
  %s3 = inlined_call_operand.hbm [shape: f32[16,128], index: 3, kind: output, shape index: {}]
  %s4 = sld [smem:[#allocation0]]
  $region38: #{tpu_custom_call.1} parent=0
    _
  %s6 = ssub.s32 1, %s4
  %s7 = scalar_select 0, %s6, %s4
  $region1: #{tpu_custom_call.1} parent=0
    #allocation3 [shape = 'u8[8192]{0}', space=vmem, size = 0x2000, scoped, tag = 'input window, operand 0, single buffered']
    #allocation4 [shape = 's32[1]{0}', space=sflag, size = 0x4, scoped, tag = 'scoped memory for tpu_custom_call.1']
    #allocation5 [shape = 's32[1]{0}', space=sflag, size = 0x4, scoped, tag = 'scoped memory for tpu_custom_call.1']
    #allocation6 [shape = 'u8[16384]{0}', space=vmem, size = 0x4000, scoped, tag = 'input window, operand 1, single buffered']
    #allocation7 [shape = 's32[1]{0}', space=sflag, size = 0x4, scoped, tag = 'scoped memory for tpu_custom_call.1']
    #allocation8 [shape = 'u8[8192]{0}', space=vmem, size = 0x2000, scoped, tag = 'output window, operand 0, single buffered']
    %8 = vsyncpa [#allocation4], 0
    %9 = vsyncpa [#allocation7], 0
    %10 = vsyncpa [#allocation5], 0
    // Predicated region
    $region2: #{tpu_custom_call.1} parent=1 // pred_check
      _
    $region3: #{tpu_custom_call.1} parent=1 // pred_check_branch
      %12 = sbr.rel (0) target = $region5
    $region4: #{tpu_custom_call.1} parent=1 // pred_region
      %s14 = ssub.s32 256, 256
      %15 = vsyncadd [#allocation4], %s14
      %s16 = sshll.u32 [#allocation3], 4
      %s17 = int_to_ptr.vmem [resolvable:$true] %s16
      %22 = dma.hbm_to_vmem [thread:$0]  %s0, 256, %s17, [#allocation4], 128, 128, 8
    $region5: #{tpu_custom_call.1} parent=1 // pred_fallthru
      _
    // Predicated region
    $region6: #{tpu_custom_call.1} parent=1 // pred_check
      _
    $region7: #{tpu_custom_call.1} parent=1 // pred_check_branch
      %24 = sbr.rel (0) target = $region9
    $region8: #{tpu_custom_call.1} parent=1 // pred_region
      %s26 = ssub.s32 512, 512
      %27 = vsyncadd [#allocation7], %s26
      %s28 = sshll.u32 [#allocation6], 4
      %s29 = int_to_ptr.vmem [resolvable:$true] %s28
      %34 = dma.hbm_to_vmem [thread:$0]  %s1, 512, %s29, [#allocation7], 64, 64, 4
    $region9: #{tpu_custom_call.1} parent=1 // pred_fallthru
      _
    // Predicated region
    $region10: #{tpu_custom_call.1} parent=1 // pred_check
      _
    $region11: #{tpu_custom_call.1} parent=1 // pred_check_branch
      %36 = sbr.rel (0) target = $region13
    $region12: #{tpu_custom_call.1} parent=1 // pred_region
      _
    $region13: #{tpu_custom_call.1} parent=1 // pred_fallthru
      _
    // Predicated region
    $region14: #{tpu_custom_call.1} parent=1 // pred_check
      _
    $region15: #{tpu_custom_call.1} parent=1 // pred_check_branch
      %38 = sbr.rel (0) target = $region17
    $region16: #{tpu_custom_call.1} parent=1 // pred_region
      %39 = dma.done [#allocation4], 256
    $region17: #{tpu_custom_call.1} parent=1 // pred_fallthru
      _
    // Predicated region
    $region18: #{tpu_custom_call.1} parent=1 // pred_check
      _
    $region19: #{tpu_custom_call.1} parent=1 // pred_check_branch
      %41 = sbr.rel (0) target = $region21
    $region20: #{tpu_custom_call.1} parent=1 // pred_region
      %42 = dma.done [#allocation7], 512
    $region21: #{tpu_custom_call.1} parent=1 // pred_fallthru
      _
    %p44 = scmp.eq.s32.totalorder 0, 0
    // Predicated region
    $region22: #{tpu_custom_call.1} parent=1 // pred_check
      %p45 = pneg %p44
    $region23: #{tpu_custom_call.1} parent=1 // pred_check_branch
      %47 = sbr.rel (%p45) target = $region25
    $region24: #{tpu_custom_call.1} parent=1 // pred_region
      %48 = vst [vmem:[#allocation2] sm:$0xff] 0.0
      %49 = vst [vmem:[#allocation2 + $0x8] sm:$0xff] 0.0
    $region25: #{tpu_custom_call.1} parent=1 // pred_fallthru
      _
    %v50 = vld [vmem:[#allocation3] sm:$0xff]
    %v51 = vld [vmem:[#allocation3 + $0x8] sm:$0xff]
    %v52 = vpack.c.bf16 %v51, %v50
    %v53 = vld [vmem:[#allocation2] sm:$0xff]
    %v54 = vld [vmem:[#allocation2 + $0x8] sm:$0xff]
    %v55 = vld [vmem:[#allocation6] sm:$0xf]
    %v56 = vld [vmem:[#allocation6 + $0x4] sm:$0xf]
    %v57 = vld [vmem:[#allocation6 + $0x8] sm:$0xf]
    %v58 = vld [vmem:[#allocation6 + $0xc] sm:$0xf]
    %v59 = vld [vmem:[#allocation6 + $0x10] sm:$0xf]
    %v60 = vld [vmem:[#allocation6 + $0x14] sm:$0xf]
    %v61 = vld [vmem:[#allocation6 + $0x18] sm:$0xf]
    %v62 = vld [vmem:[#allocation6 + $0x1c] sm:$0xf]
    %v71 = vunpack.c.l.b16 %v55
    %v72 = vunpack.c.l.b16 %v56
    %v73 = vunpack.c.l.b16 %v57
    %v74 = vunpack.c.l.b16 %v58
    %v75 = vunpack.c.l.b16 %v59
    %v76 = vunpack.c.l.b16 %v60
    %v77 = vunpack.c.l.b16 %v61
    %v78 = vunpack.c.l.b16 %v62
    %v79 = vpack.c.b16 %v72, %v71
    %v80 = vpack.c.b16 %v74, %v73
    %v81 = vpack.c.b16 %v76, %v75
    %v82 = vpack.c.b16 %v78, %v77
    %vm87 = vcmask 523264
    %v89 = vsel %vm87, %v52, 0
    %91 = vmatprep.subr.bf16.mxu0 0
    %92 = vmatpush1.bf16.msra.mxu0 %v79
    %93 = vmatprep.subr.bf16.mxu0 0
    %94 = vmatpush1.bf16.msra.mxu0 %v80
    %95 = vmatprep.subr.bf16.mxu0 0
    %96 = vmatpush1.bf16.msra.mxu0 %v81
    %97 = vmatprep.subr.bf16.mxu0 0
    %98 = vmatpush1.bf16.msra.mxu0 %v82
    %99 = vmatprep.subr.bf16.mxu0 0
    %100 = vmatpush1.bf16.msra.mxu0 0
    %101 = vmatprep.subr.bf16.mxu0 0
    %102 = vmatpush1.bf16.msra.mxu0 0
    %103 = vmatprep.subr.bf16.mxu0 0
    %104 = vmatpush1.bf16.msra.mxu0 0
    %105 = vmatprep.subr.bf16.mxu0 0
    %106 = vmatpush1.bf16.msra.mxu0 0
    %107 = vmatprep.subr.bf16.mxu0 0
    %108 = vmatpush1.bf16.msra.mxu0 0
    %109 = vmatprep.subr.bf16.mxu0 0
    %110 = vmatpush1.bf16.msra.mxu0 0
    %111 = vmatprep.subr.bf16.mxu0 0
    %112 = vmatpush1.bf16.msra.mxu0 0
    %113 = vmatprep.subr.bf16.mxu0 0
    %114 = vmatpush1.bf16.msra.mxu0 0
    %115 = vmatprep.subr.bf16.mxu0 0
    %116 = vmatpush1.bf16.msra.mxu0 0
    %117 = vmatprep.subr.bf16.mxu0 0
    %118 = vmatpush1.bf16.msra.mxu0 0
    %119 = vmatprep.subr.bf16.mxu0 0
    %120 = vmatpush1.bf16.msra.mxu0 0
    %121 = vmatprep.subr.bf16.mxu0 0
    %122 = vmatpush1.bf16.msra.mxu0 0
    %123 = vmatprep.mubr.bf16.mxu0 0
    %124 = vmatmul.mubr.bf16.gmra.mrb[0].mxu0 %v89
    %v125 = vpop.f32.mrb[0].mxu0
    %v126 = vadd.f32 0.0, %v125
    %v127 = vpop.f32.mrb[0].mxu0
    %v128 = vpop.f32.mrb[0].mxu0
    %v129 = vadd.f32 0.0, %v128
    %v130 = vpop.f32.mrb[0].mxu0
    %131 = vdwg.mxu0
    %v132 = vadd.f32 %v53, %v126
    %v133 = vadd.f32 %v54, %v129
    %134 = vst [vmem:[#allocation2] sm:$0xff] %v132
    %135 = vst [vmem:[#allocation2 + $0x8] sm:$0xff] %v133
    // Predicated region
    $region26: #{tpu_custom_call.1} parent=1 // pred_check
      %p136 = pneg %p44
    $region27: #{tpu_custom_call.1} parent=1 // pred_check_branch
      %138 = sbr.rel (%p136) target = $region29
    $region28: #{tpu_custom_call.1} parent=1 // pred_region
      %v139 = vld [vmem:[#allocation2] sm:$0xff]
      %v140 = vld [vmem:[#allocation2 + $0x8] sm:$0xff]
      %v141 = vld [vmem:[%s2] sm:$0x1]
      %v143 = vlaneseq
      %v144 = vshrl.u32 %v143, 7
      %v145 = vsub.s32 0, %v144
      %v146 = vrot.slane %v141, %v145
      %v148 = vadd.f32 %v139, %v146
      %v149 = vadd.f32 %v140, %v146
      %v150 = vmax.f32 %v148, 0.0
      %v151 = vmax.f32 %v149, 0.0
      %152 = vst [vmem:[#allocation8] sm:$0xff] %v150
      %153 = vst [vmem:[#allocation8 + $0x8] sm:$0xff] %v151
    $region29: #{tpu_custom_call.1} parent=1 // pred_fallthru
      _
    // Predicated region
    $region30: #{tpu_custom_call.1} parent=1 // pred_check
      _
    $region31: #{tpu_custom_call.1} parent=1 // pred_check_branch
      %155 = sbr.rel (0) target = $region33
    $region32: #{tpu_custom_call.1} parent=1 // pred_region
      %s157 = ssub.s32 256, 256
      %158 = vsyncadd [#allocation5], %s157
      %s159 = sshll.u32 [#allocation8], 4
      %s160 = int_to_ptr.vmem [resolvable:$true] %s159
      %165 = dma.vmem_to_hbm [thread:$0]  %s160, 256, %s3, [#allocation5], 128, 128, 8
    $region33: #{tpu_custom_call.1} parent=1 // pred_fallthru
      _
    // Predicated region
    $region34: #{tpu_custom_call.1} parent=1 // pred_check
      _
    $region35: #{tpu_custom_call.1} parent=1 // pred_check_branch
      %167 = sbr.rel (0) target = $region37
    $region36: #{tpu_custom_call.1} parent=1 // pred_region
      %168 = dma.done [#allocation5], 256
    $region37: #{tpu_custom_call.1} parent=1 // pred_fallthru
      _
    %169 = vsyncpa [#allocation4], 1
    %170 = vsyncpa [#allocation7], 1
    %171 = vsyncpa [#allocation5], 1

</llo_original>
